<compile_context>
chip_gen: v5e
topology: v5e:2x2
jax: 0.10.0
libtpu: 0.0.40
codegen_flags: <defaults>
</compile_context>

<pallas_src>
import functools

import jax
import jax.numpy as jnp
from jax.experimental import pallas as pl
from jax.experimental.pallas import tpu as pltpu


def _round_up(n, m):
    return ((n + m - 1) // m) * m


def actor_kernel(x_ref, wlff_ref, blff_ref, w1_ref, b1_ref, w2_ref, b2_ref,
                 wm_ref, bm_ref, out_ref, *, act_limit, mm_dtype):
    def mm(a, w_ref):
        # Matmul inputs may be bf16 (v6e/v7x MXU fast path); accumulation is f32.
        return jnp.dot(a.astype(mm_dtype), w_ref[...],
                       preferred_element_type=jnp.float32)

    x = x_ref[...]                                         # (TB, D_in) f32

    # LFF: sin(linear(x))
    h = jnp.sin(mm(x, wlff_ref) + blff_ref[...])           # (TB, F)

    # MLP hidden layer 1 (ReLU)
    h = jnp.maximum(mm(h, w1_ref) + b1_ref[...], 0.0)      # (TB, H)

    # MLP hidden layer 2 (ReLU, output_activation)
    h = jnp.maximum(mm(h, w2_ref) + b2_ref[...], 0.0)      # (TB, H)

    # mean head + squash
    m = mm(h, wm_ref) + bm_ref[...]                        # (TB, A)
    out_ref[...] = jnp.tanh(m) * act_limit


@functools.partial(jax.jit, static_argnames=("act_limit", "tb_max", "bf16_matmul"))
def actor_forward(x, params, *, act_limit, tb_max=1024, bf16_matmul=True):
    """x: (B, obs+goal) float32. params: dict of (in, out)-layout weights."""
    B, D_in = x.shape
    A = params["wm"].shape[1]

    # Batch tile: multiple of 8 sublanes, large to amortize per-grid-step overhead.
    TB = min(tb_max, _round_up(B, 8))
    # Prefer >=2 grid steps so both v7x TensorCores get work (harmless on v5e/v6e).
    if _round_up(B, 8) // TB < 2 and TB >= 16:
        TB = _round_up(TB // 2, 8)
    B_p = _round_up(B, TB)

    x_p = jnp.pad(x, ((0, B_p - B), (0, 0))) if B_p != B else x

    mm_dtype = jnp.bfloat16 if bf16_matmul else jnp.float32
    weight_args = (
        params["wlff"].astype(mm_dtype), params["blff"],
        params["w1"].astype(mm_dtype),   params["b1"],
        params["w2"].astype(mm_dtype),   params["b2"],
        params["wm"].astype(mm_dtype),   params["bm"],
    )

    def batch_map(i):
        return (i, 0)

    def resident_map(i):      # same block every step -> weights stay resident
        return (0, 0)

    # x / out tiled over the batch grid axis; weights & biases unpadded,
    # full-array blocks (block_shape == array shape is always legal).
    in_specs = [pl.BlockSpec((TB, D_in), batch_map)]
    in_specs += [pl.BlockSpec(w.shape, resident_map) for w in weight_args]
    out_spec = pl.BlockSpec((TB, A), batch_map)

    out_p = pl.pallas_call(
        functools.partial(actor_kernel, act_limit=act_limit, mm_dtype=mm_dtype),
        out_shape=jax.ShapeDtypeStruct((B_p, A), jnp.float32),
        grid=(B_p // TB,),
        in_specs=in_specs,
        out_specs=out_spec,
        compiler_params=pltpu.CompilerParams(
            dimension_semantics=("parallel",)),  # batch axis -> both TCs on v7x
    )(x_p, *weight_args)

    return out_p[:B]


def init_params(key, input_dim, fourier_dim, hid_size, action_dim, fourier_b):
    """Deterministic synthetic init. Weights stored as (in, out)."""
    ks = jax.random.split(key, 8)
    return {
        "wlff": jax.random.normal(ks[0], (input_dim, fourier_dim), jnp.float32)
                * (fourier_b / input_dim),
        "blff": jax.random.uniform(ks[1], (1, fourier_dim), jnp.float32, -1.0, 1.0),
        "w1": jax.random.normal(ks[2], (fourier_dim, hid_size), jnp.float32) * 0.1,
        "b1": jax.random.normal(ks[3], (1, hid_size), jnp.float32) * 0.01,
        "w2": jax.random.normal(ks[4], (hid_size, hid_size), jnp.float32) * 0.1,
        "b2": jax.random.normal(ks[5], (1, hid_size), jnp.float32) * 0.01,
        "wm": jax.random.normal(ks[6], (hid_size, action_dim), jnp.float32) * 0.1,
        "bm": jax.random.normal(ks[7], (1, action_dim), jnp.float32) * 0.01,
    }


def actor_ref(x, params, act_limit):
    """Pure-JAX f32 reference for correctness check."""
    h = jnp.sin(x @ params["wlff"] + params["blff"])
    h = jnp.maximum(h @ params["w1"] + params["b1"], 0.0)
    h = jnp.maximum(h @ params["w2"] + params["b2"], 0.0)
    m = h @ params["wm"] + params["bm"]
    return jnp.tanh(m) * act_limit


if __name__ == "__main__":
    # env_params / args analogue (small, consistent with the module):
    obs_dim, goal_dim = 12, 4
    input_dim = obs_dim + goal_dim                # 16
    fourier_dim_ratio = 4
    fourier_dim = fourier_dim_ratio * input_dim   # 64  (mlp_input_dim)
    hid_size = 32
    n_hids = 2
    action_dim = 4
    act_limit = 1.0
    fourier_b = 1.0

    key = jax.random.PRNGKey(0)
    kx1, kx2, kp = jax.random.split(key, 3)
    params = init_params(kp, input_dim, fourier_dim, hid_size, action_dim, fourier_b)

    # 1) f32 matmul path: exact check vs the f32 reference (batch=8, single tile).
    x1 = jax.random.normal(kx1, (8, input_dim), jnp.float32)
    pi1 = jax.block_until_ready(
        actor_forward(x1, params, act_limit=act_limit, bf16_matmul=False))
    ref1 = actor_ref(x1, params, act_limit)
    assert pi1.shape == (8, action_dim)
    assert jnp.allclose(pi1, ref1, atol=1e-5, rtol=1e-5), "f32 path mismatch vs reference"

    # 2) bf16-MXU fast path (v6e/v7x default): exercises batch padding + 2-step grid.
    x2 = jax.random.normal(kx2, (100, input_dim), jnp.float32)
    pi2 = jax.block_until_ready(
        actor_forward(x2, params, act_limit=act_limit, bf16_matmul=True))
    ref2 = actor_ref(x2, params, act_limit)
    assert pi2.shape == (100, action_dim)
    assert jnp.allclose(pi2, ref2, atol=3e-2, rtol=3e-2), "bf16 path mismatch vs reference"

    print("KERNEL_OK")
</pallas_src>

<mosaic_0001>
module attributes {stable_mosaic.version = 11 : i64} {
  func.func @actor_kernel(%arg0: i32, %arg1: memref<8x16xf32, #tpu.memory_space<vmem>>, %arg2: memref<16x64xf32, #tpu.memory_space<vmem>>, %arg3: memref<1x64xf32, #tpu.memory_space<vmem>>, %arg4: memref<64x32xf32, #tpu.memory_space<vmem>>, %arg5: memref<1x32xf32, #tpu.memory_space<vmem>>, %arg6: memref<32x32xf32, #tpu.memory_space<vmem>>, %arg7: memref<1x32xf32, #tpu.memory_space<vmem>>, %arg8: memref<32x4xf32, #tpu.memory_space<vmem>>, %arg9: memref<1x4xf32, #tpu.memory_space<vmem>>, %arg10: memref<8x4xf32, #tpu.memory_space<vmem>>) attributes {dimension_semantics = [#tpu.dimension_semantics<parallel>], iteration_bounds = array<i64: 1>, scalar_prefetch = 0 : i64, scratch_operands = 0 : i64, tpu.core_type = #tpu.core_type<tc>, window_params = [{transform_indices = @transform_0, window_bounds = array<i64: 8, 16>}, {pipeline_mode = #tpu.pipeline_mode<synchronous>, transform_indices = @transform_1, window_bounds = array<i64: 16, 64>}, {pipeline_mode = #tpu.pipeline_mode<synchronous>, transform_indices = @transform_2, window_bounds = array<i64: 1, 64>}, {pipeline_mode = #tpu.pipeline_mode<synchronous>, transform_indices = @transform_3, window_bounds = array<i64: 64, 32>}, {pipeline_mode = #tpu.pipeline_mode<synchronous>, transform_indices = @transform_4, window_bounds = array<i64: 1, 32>}, {pipeline_mode = #tpu.pipeline_mode<synchronous>, transform_indices = @transform_5, window_bounds = array<i64: 32, 32>}, {pipeline_mode = #tpu.pipeline_mode<synchronous>, transform_indices = @transform_6, window_bounds = array<i64: 1, 32>}, {pipeline_mode = #tpu.pipeline_mode<synchronous>, transform_indices = @transform_7, window_bounds = array<i64: 32, 4>}, {pipeline_mode = #tpu.pipeline_mode<synchronous>, transform_indices = @transform_8, window_bounds = array<i64: 1, 4>}, {transform_indices = @transform_9, window_bounds = array<i64: 8, 4>}]} {
    %c0 = arith.constant 0 : index
    %c0_0 = arith.constant 0 : index
    %0 = vector.load %arg1[%c0, %c0_0] : memref<8x16xf32, #tpu.memory_space<vmem>>, vector<8x16xf32>
    %c0_1 = arith.constant 0 : index
    %c0_2 = arith.constant 0 : index
    %1 = vector.load %arg2[%c0_1, %c0_2] : memref<16x64xf32, #tpu.memory_space<vmem>>, vector<16x64xf32>
    %cst = arith.constant dense<0.000000e+00> : vector<8x64xf32>
    %2 = tpu.matmul %0, %1, %cst {dimension_numbers = #tpu.dot_dimension_numbers<[1], [0], [0], [1], [0, 0, 1, 1], [], []>} : vector<8x16xf32>, vector<16x64xf32>, vector<8x64xf32> -> vector<8x64xf32>
    %c0_3 = arith.constant 0 : index
    %c0_4 = arith.constant 0 : index
    %3 = vector.load %arg3[%c0_3, %c0_4] : memref<1x64xf32, #tpu.memory_space<vmem>>, vector<1x64xf32>
    %4 = vector.broadcast %3 : vector<1x64xf32> to vector<8x64xf32>
    %5 = arith.addf %2, %4 : vector<8x64xf32>
    %6 = math.sin %5 : vector<8x64xf32>
    %c0_5 = arith.constant 0 : index
    %c0_6 = arith.constant 0 : index
    %7 = vector.load %arg4[%c0_5, %c0_6] : memref<64x32xf32, #tpu.memory_space<vmem>>, vector<64x32xf32>
    %cst_7 = arith.constant dense<0.000000e+00> : vector<8x32xf32>
    %8 = tpu.matmul %6, %7, %cst_7 {dimension_numbers = #tpu.dot_dimension_numbers<[1], [0], [0], [1], [0, 0, 1, 1], [], []>} : vector<8x64xf32>, vector<64x32xf32>, vector<8x32xf32> -> vector<8x32xf32>
    %c0_8 = arith.constant 0 : index
    %c0_9 = arith.constant 0 : index
    %9 = vector.load %arg5[%c0_8, %c0_9] : memref<1x32xf32, #tpu.memory_space<vmem>>, vector<1x32xf32>
    %10 = vector.broadcast %9 : vector<1x32xf32> to vector<8x32xf32>
    %11 = arith.addf %8, %10 : vector<8x32xf32>
    %cst_10 = arith.constant 0.000000e+00 : f32
    %12 = vector.broadcast %cst_10 : f32 to vector<8x32xf32>
    %13 = arith.maximumf %11, %12 : vector<8x32xf32>
    %c0_11 = arith.constant 0 : index
    %c0_12 = arith.constant 0 : index
    %14 = vector.load %arg6[%c0_11, %c0_12] : memref<32x32xf32, #tpu.memory_space<vmem>>, vector<32x32xf32>
    %cst_13 = arith.constant dense<0.000000e+00> : vector<8x32xf32>
    %15 = tpu.matmul %13, %14, %cst_13 {dimension_numbers = #tpu.dot_dimension_numbers<[1], [0], [0], [1], [0, 0, 1, 1], [], []>} : vector<8x32xf32>, vector<32x32xf32>, vector<8x32xf32> -> vector<8x32xf32>
    %c0_14 = arith.constant 0 : index
    %c0_15 = arith.constant 0 : index
    %16 = vector.load %arg7[%c0_14, %c0_15] : memref<1x32xf32, #tpu.memory_space<vmem>>, vector<1x32xf32>
    %17 = vector.broadcast %16 : vector<1x32xf32> to vector<8x32xf32>
    %18 = arith.addf %15, %17 : vector<8x32xf32>
    %cst_16 = arith.constant 0.000000e+00 : f32
    %19 = vector.broadcast %cst_16 : f32 to vector<8x32xf32>
    %20 = arith.maximumf %18, %19 : vector<8x32xf32>
    %c0_17 = arith.constant 0 : index
    %c0_18 = arith.constant 0 : index
    %21 = vector.load %arg8[%c0_17, %c0_18] : memref<32x4xf32, #tpu.memory_space<vmem>>, vector<32x4xf32>
    %cst_19 = arith.constant dense<0.000000e+00> : vector<8x4xf32>
    %22 = tpu.matmul %20, %21, %cst_19 {dimension_numbers = #tpu.dot_dimension_numbers<[1], [0], [0], [1], [0, 0, 1, 1], [], []>} : vector<8x32xf32>, vector<32x4xf32>, vector<8x4xf32> -> vector<8x4xf32>
    %c0_20 = arith.constant 0 : index
    %c0_21 = arith.constant 0 : index
    %23 = vector.load %arg9[%c0_20, %c0_21] : memref<1x4xf32, #tpu.memory_space<vmem>>, vector<1x4xf32>
    %24 = vector.broadcast %23 : vector<1x4xf32> to vector<8x4xf32>
    %25 = arith.addf %22, %24 : vector<8x4xf32>
    %26 = math.tanh %25 : vector<8x4xf32>
    %cst_22 = arith.constant 1.000000e+00 : f32
    %27 = vector.broadcast %cst_22 : f32 to vector<8x4xf32>
    %28 = arith.mulf %26, %27 : vector<8x4xf32>
    %c0_23 = arith.constant 0 : index
    %c0_24 = arith.constant 0 : index
    %29 = vector.load %arg10[%c0_23, %c0_24] : memref<8x4xf32, #tpu.memory_space<vmem>>, vector<8x4xf32>
    tpu.vector_store %arg10[%c0_23, %c0_24], %28 {strides = array<i32>} : memref<8x4xf32, #tpu.memory_space<vmem>>, vector<8x4xf32>,
    return
  }
  func.func @transform_0(%arg0: i32) -> (i32, i32) {
    %c0_i32 = arith.constant 0 : i32
    %c0_i32_0 = arith.constant 0 : i32
    return %arg0, %c0_i32 : i32, i32
  }
  func.func @transform_1(%arg0: i32) -> (i32, i32) {
    %c0_i32 = arith.constant 0 : i32
    %c0_i32_0 = arith.constant 0 : i32
    %c0_i32_1 = arith.constant 0 : i32
    return %c0_i32, %c0_i32_0 : i32, i32
  }
  func.func @transform_2(%arg0: i32) -> (i32, i32) {
    %c0_i32 = arith.constant 0 : i32
    %c0_i32_0 = arith.constant 0 : i32
    %c0_i32_1 = arith.constant 0 : i32
    return %c0_i32, %c0_i32_0 : i32, i32
  }
  func.func @transform_3(%arg0: i32) -> (i32, i32) {
    %c0_i32 = arith.constant 0 : i32
    %c0_i32_0 = arith.constant 0 : i32
    %c0_i32_1 = arith.constant 0 : i32
    return %c0_i32, %c0_i32_0 : i32, i32
  }
  func.func @transform_4(%arg0: i32) -> (i32, i32) {
    %c0_i32 = arith.constant 0 : i32
    %c0_i32_0 = arith.constant 0 : i32
    %c0_i32_1 = arith.constant 0 : i32
    return %c0_i32, %c0_i32_0 : i32, i32
  }
  func.func @transform_5(%arg0: i32) -> (i32, i32) {
    %c0_i32 = arith.constant 0 : i32
    %c0_i32_0 = arith.constant 0 : i32
    %c0_i32_1 = arith.constant 0 : i32
    return %c0_i32, %c0_i32_0 : i32, i32
  }
  func.func @transform_6(%arg0: i32) -> (i32, i32) {
    %c0_i32 = arith.constant 0 : i32
    %c0_i32_0 = arith.constant 0 : i32
    %c0_i32_1 = arith.constant 0 : i32
    return %c0_i32, %c0_i32_0 : i32, i32
  }
  func.func @transform_7(%arg0: i32) -> (i32, i32) {
    %c0_i32 = arith.constant 0 : i32
    %c0_i32_0 = arith.constant 0 : i32
    %c0_i32_1 = arith.constant 0 : i32
    return %c0_i32, %c0_i32_0 : i32, i32
  }
  func.func @transform_8(%arg0: i32) -> (i32, i32) {
    %c0_i32 = arith.constant 0 : i32
    %c0_i32_0 = arith.constant 0 : i32
    %c0_i32_1 = arith.constant 0 : i32
    return %c0_i32, %c0_i32_0 : i32, i32
  }
  func.func @transform_9(%arg0: i32) -> (i32, i32) {
    %c0_i32 = arith.constant 0 : i32
    %c0_i32_0 = arith.constant 0 : i32
    return %arg0, %c0_i32 : i32, i32
  }
}

</mosaic_0001>

<llo_original>
// kernel: actor_forward.1
$region0: #{actor_forward.1}
  #allocation0 [shape = 'u32[]', space=smem, size = 0x4, offset = 0x4, fixed_abs, tag = 'smem constant byte address 0x4 - core index']
  #allocation1 [shape = 'u32[72,128]{1,0:T(1,128)}', space=vmem, size = 0x9000, scoped, tag = 'internal scratch']
  %s0 = inlined_call_operand.vmem [shape: f32[8,16], index: 0, kind: input, shape index: {}]
  %s1 = inlined_call_operand.vmem [shape: f32[16,64], index: 1, kind: input, shape index: {}]
  %s2 = inlined_call_operand.vmem [shape: f32[1,64], index: 2, kind: input, shape index: {}]
  %s3 = inlined_call_operand.vmem [shape: f32[64,32], index: 3, kind: input, shape index: {}]
  %s4 = inlined_call_operand.vmem [shape: f32[1,32], index: 4, kind: input, shape index: {}]
  %s5 = inlined_call_operand.vmem [shape: f32[32,32], index: 5, kind: input, shape index: {}]
  %s6 = inlined_call_operand.vmem [shape: f32[1,32], index: 6, kind: input, shape index: {}]
  %s7 = inlined_call_operand.vmem [shape: f32[32,4], index: 7, kind: input, shape index: {}]
  %s8 = inlined_call_operand.vmem [shape: f32[1,4], index: 8, kind: input, shape index: {}]
  %s9 = inlined_call_operand.vmem [shape: f32[8,4], index: 9, kind: output, shape index: {}]
  %s10 = sld [smem:[#allocation0]]
  $region46: #{actor_forward.1} parent=0
    _
  %s12 = ssub.s32 1, %s10
  %s13 = scalar_select 0, %s12, %s10
  // Predicated region
  $region2: #{actor_forward.1} parent=0 // pred_check
    _
  $region3: #{actor_forward.1} parent=0 // pred_check_branch
    %15 = sbr.rel (0) target = $region5
  $region4: #{actor_forward.1} parent=0 // pred_region
    _
  $region5: #{actor_forward.1} parent=0 // pred_fallthru
    _
  // Predicated region
  $region6: #{actor_forward.1} parent=0 // pred_check
    _
  $region7: #{actor_forward.1} parent=0 // pred_check_branch
    %17 = sbr.rel (0) target = $region9
  $region8: #{actor_forward.1} parent=0 // pred_region
    _
  $region9: #{actor_forward.1} parent=0 // pred_fallthru
    _
  // Predicated region
  $region10: #{actor_forward.1} parent=0 // pred_check
    _
  $region11: #{actor_forward.1} parent=0 // pred_check_branch
    %19 = sbr.rel (0) target = $region13
  $region12: #{actor_forward.1} parent=0 // pred_region
    _
  $region13: #{actor_forward.1} parent=0 // pred_fallthru
    _
  // Predicated region
  $region14: #{actor_forward.1} parent=0 // pred_check
    _
  $region15: #{actor_forward.1} parent=0 // pred_check_branch
    %21 = sbr.rel (0) target = $region17
  $region16: #{actor_forward.1} parent=0 // pred_region
    _
  $region17: #{actor_forward.1} parent=0 // pred_fallthru
    _
  // Predicated region
  $region18: #{actor_forward.1} parent=0 // pred_check
    _
  $region19: #{actor_forward.1} parent=0 // pred_check_branch
    %23 = sbr.rel (0) target = $region21
  $region20: #{actor_forward.1} parent=0 // pred_region
    _
  $region21: #{actor_forward.1} parent=0 // pred_fallthru
    _
  // Predicated region
  $region22: #{actor_forward.1} parent=0 // pred_check
    _
  $region23: #{actor_forward.1} parent=0 // pred_check_branch
    %25 = sbr.rel (0) target = $region25
  $region24: #{actor_forward.1} parent=0 // pred_region
    _
  $region25: #{actor_forward.1} parent=0 // pred_fallthru
    _
  // Predicated region
  $region26: #{actor_forward.1} parent=0 // pred_check
    _
  $region27: #{actor_forward.1} parent=0 // pred_check_branch
    %27 = sbr.rel (0) target = $region29
  $region28: #{actor_forward.1} parent=0 // pred_region
    _
  $region29: #{actor_forward.1} parent=0 // pred_fallthru
    _
  // Predicated region
  $region30: #{actor_forward.1} parent=0 // pred_check
    _
  $region31: #{actor_forward.1} parent=0 // pred_check_branch
    %29 = sbr.rel (0) target = $region33
  $region32: #{actor_forward.1} parent=0 // pred_region
    _
  $region33: #{actor_forward.1} parent=0 // pred_fallthru
    _
  // Predicated region
  $region34: #{actor_forward.1} parent=0 // pred_check
    _
  $region35: #{actor_forward.1} parent=0 // pred_check_branch
    %31 = sbr.rel (0) target = $region37
  $region36: #{actor_forward.1} parent=0 // pred_region
    _
  $region37: #{actor_forward.1} parent=0 // pred_fallthru
    _
  %v32 = vld [vmem:[%s0] sm:$0xff]
  %v33 = vld [vmem:[%s1] sm:$0xff]
  %v34 = vld [vmem:[%s1 + $0x8] sm:$0xff]
  %v35 = vld [vmem:[%s2] sm:$0x1]
  %v37 = vperm.slane %v35, 0
  %vm39 = vcmask 130048
  %v41 = vsel %vm39, %v32, 0
  %43 = vmatpush.msra.mxu0 0.0
  %44 = vmatpush.msra.mxu0 0.0
  %45 = vmatpush.msra.mxu0 0.0
  %46 = vmatpush.msra.mxu0 0.0
  %47 = vmatpush.msra.mxu0 0.0
  %48 = vmatpush.msra.mxu0 0.0
  %49 = vmatpush.msra.mxu0 0.0
  %50 = vmatpush.msra.mxu0 0.0
  %51 = vmatpush.msra.mxu0 0.0
  %52 = vmatpush.msra.mxu0 0.0
  %53 = vmatpush.msra.mxu0 0.0
  %54 = vmatpush.msra.mxu0 0.0
  %55 = vmatpush.msra.mxu0 0.0
  %56 = vmatpush.msra.mxu0 0.0
  %57 = vmatpush.msra.mxu0 %v34
  %58 = vmatpush.msra.mxu0 %v33
  %59 = vmatmul.f32.gmra.mxu0 %v41
  %v60 = vpop.f32.mrf.mxu0
  %v61 = vadd.f32 %v37, %v60
  %62 = vdwg.mxu0
  %v63 = vand.u32 2147483647, %v61
  %vm64 = vcmp.le.f32.partialorder %v63, 0.7853982
  %vm65 = vcmp.lt.s32.totalorder %v61, 0
  %v66 = vand.u32 %v61, 2139095040
  %v67 = vshrl.u32 %v66, 23
  %v68 = vsub.s32 %v67, 127
  %v69 = vand.u32 2147483647, %v61
  %v70 = vand.u32 %v69, 8388607
  %v71 = vor.u32 %v70, 8388608
  %v72 = vsub.s32 0, %v71
  %v73 = vadd.s32 %v68, 1
  %vm74 = vcmp.gt.s32.totalorder %v73, 0
  %v75 = vsel %vm74, %v73, 0
  %v76 = vshrl.u32 %v75, 5
  %v77 = vand.u32 %v75, 31
  %v78 = vsub.s32 32, %v77
  %v79 = vshrl.u32 683565275, %v78
  %v80 = vshll.u32 683565275, %v77
  %v81 = vshrl.u32 2475754826, %v78
  %v82 = vor.u32 %v80, %v81
  %v83 = vshll.u32 2475754826, %v77
  %v84 = vshrl.u32 2131351028, %v78
  %v85 = vor.u32 %v83, %v84
  %v86 = vshll.u32 2131351028, %v77
  %v87 = vshrl.u32 2102212464, %v78
  %v88 = vor.u32 %v86, %v87
  %v89 = vshll.u32 2102212464, %v77
  %v90 = vshrl.u32 920167782, %v78
  %v91 = vor.u32 %v89, %v90
  %v92 = vshll.u32 920167782, %v77
  %v93 = vshrl.u32 1326507024, %v78
  %v94 = vor.u32 %v92, %v93
  %vm95 = vcmp.lt.s32.totalorder %v76, 1
  %vm96 = vcmp.lt.s32.totalorder %v76, 2
  %vm97 = vcmp.lt.s32.totalorder %v76, 3
  %vm98 = vcmp.lt.s32.totalorder %v76, 4
  %v99 = vsel %vm95, %v79, %v82
  %v100 = vsel %vm98, %v88, 2102212464
  %v101 = vsel %vm97, %v85, %v100
  %v102 = vsel %vm96, %v99, %v101
  %v103 = vsel %vm95, %v82, %v85
  %v104 = vsel %vm98, %v91, 920167782
  %v105 = vsel %vm97, %v88, %v104
  %v106 = vsel %vm96, %v103, %v105
  %v107 = vsel %vm95, %v85, %v88
  %v108 = vsel %vm98, %v94, 1326507024
  %v109 = vsel %vm97, %v91, %v108
  %v110 = vsel %vm96, %v107, %v109
  %v111 = vshll.u32 %v71, 8
  %v112 = vand.u32 %v111, 65535
  %v113 = vshrl.u32 %v111, 16
  %v114 = vand.u32 %v110, 65535
  %v115 = vshrl.u32 %v110, 16
  %v116 = vmul.u32 %v112, %v114
  %v117 = vmul.u32 %v112, %v115
  %v118 = vmul.u32 %v113, %v114
  %v119 = vmul.u32 %v113, %v115
  %v120 = vshll.u32 %v117, 16
  %v121 = vshrl.u32 %v117, 16
  %v122 = vshll.u32 %v118, 16
  %v123 = vshrl.u32 %v118, 16
  %vm124 = vc.u32 %v116, %v120
  %v125 = vsel %vm124, 1, 0
  %v126 = vadd.s32 %v116, %v120
  %v127 = vadd.s32 %v119, %v125
  %vm128 = vc.u32 %v126, %v122
  %v129 = vsel %vm128, 1, 0
  %v130 = vadd.s32 %v126, %v122
  %v131 = vadd.s32 %v127, %v129
  %v132 = vadd.s32 %v131, %v121
  %v133 = vadd.s32 %v132, %v123
  %v134 = vand.u32 %v111, 65535
  %v135 = vshrl.u32 %v111, 16
  %v136 = vand.u32 %v106, 65535
  %v137 = vshrl.u32 %v106, 16
  %v138 = vmul.u32 %v134, %v136
  %v139 = vmul.u32 %v134, %v137
  %v140 = vmul.u32 %v135, %v136
  %v141 = vmul.u32 %v135, %v137
  %v142 = vshll.u32 %v139, 16
  %v143 = vshrl.u32 %v139, 16
  %v144 = vshll.u32 %v140, 16
  %v145 = vshrl.u32 %v140, 16
  %vm146 = vc.u32 %v138, %v142
  %v147 = vsel %vm146, 1, 0
  %v148 = vadd.s32 %v138, %v142
  %v149 = vadd.s32 %v141, %v147
  %vm150 = vc.u32 %v148, %v144
  %v151 = vsel %vm150, 1, 0
  %v152 = vadd.s32 %v148, %v144
  %v153 = vadd.s32 %v149, %v151
  %v154 = vadd.s32 %v153, %v143
  %v155 = vadd.s32 %v154, %v145
  %v156 = vmul.u32 %v111, %v102
  %v157 = vadd.s32 %v133, %v152
  %vm158 = vc.u32 %v133, %v152
  %v159 = vadd.s32 %v155, 1
  %v160 = vsel %vm158, %v159, %v155
  %v161 = vadd.s32 %v156, %v160
  %v162 = vadd.s32 %v161, 536870912
  %v163 = vshrl.u32 %v162, 30
  %v164 = vshll.u32 %v163, 30
  %v165 = vsub.s32 %v161, %v164
  %vm166 = vcmp.lt.s32.totalorder %v165, 0
  %v167 = vsub.s32 0, %v165
  %v168 = vsel %vm166, %v167, %v165
  %v169 = vclz %v168
  %v170 = vsub.s32 %v169, 2
  %vm171 = vcmp.gt.s32.totalorder 0, %v170
  %v172 = vsel %vm171, 0, %v170
  %v173 = vsub.s32 32, %v172
  %v174 = vshll.u32 %v165, %v172
  %v175 = vshrl.u32 %v157, %v173
  %v176 = vor.u32 %v174, %v175
  %v177 = vsub.s32 4294967266, %v172
  %v178 = vadd.s32 %v177, 127
  %v179 = vshll.u32 %v178, 23
  %v180 = vor.u32 4788187, %v179
  %v181 = vand.u32 2147483647, %v180
  %v183 = vcvt.s32.f32 %v176
  %v184 = vmul.f32 %v183, %v181
  %v185 = vxor.u32 %v184, 2147483648
  %v186 = vsel %vm65, %v185, %v184
  %v187 = vsub.s32 4, %v163
  %v188 = vsel %vm65, %v187, %v163
  %v189 = vsel %vm64, %v61, %v186
  %v190 = vsel %vm64, 0, %v188
  %v191 = vmul.f32 %v189, %v189
  %v192 = vmul.f32 %v191, -0.001358992
  %v193 = vadd.f32 %v192, 0.041655596
  %v194 = vmul.f32 %v191, %v193
  %v195 = vadd.f32 %v194, -0.4999988
  %v196 = vmul.f32 %v191, %v195
  %v197 = vadd.f32 1.0, %v196
  %v198 = vmul.f32 %v189, %v189
  %v199 = vmul.f32 %v198, -0.00019511016
  %v200 = vadd.f32 %v199, 0.008332121
  %v201 = vmul.f32 %v198, %v200
  %v202 = vadd.f32 %v201, -0.16666654
  %v203 = vmul.f32 %v198, %v202
  %v204 = vadd.f32 %v203, 1.0
  %v205 = vmul.f32 %v204, %v189
  %vm206 = vweird.f32 %v61
  %v207 = vadd.s32 %v190, 3
  %v208 = vand.u32 %v207, 3
  %vm209 = vcmp.lt.s32.totalorder %v208, 2
  %vm210 = vcmp.eq.s32.totalorder %v208, 0
  %v211 = vxor.u32 %v205, 2147483648
  %v212 = vsel %vm210, %v197, %v211
  %vm213 = vcmp.eq.s32.totalorder %v208, 2
  %v214 = vxor.u32 %v197, 2147483648
  %v215 = vsel %vm213, %v214, %v205
  %v216 = vsel %vm209, %v212, %v215
  %v217 = vsel %vm206, nan, %v216
  %v218 = vld [vmem:[%s3] sm:$0xff]
  %v219 = vld [vmem:[%s3 + $0x8] sm:$0xff]
  %v220 = vld [vmem:[%s3 + $0x10] sm:$0xff]
  %v221 = vld [vmem:[%s3 + $0x18] sm:$0xff]
  %v222 = vld [vmem:[%s3 + $0x20] sm:$0xff]
  %v223 = vld [vmem:[%s3 + $0x28] sm:$0xff]
  %v224 = vld [vmem:[%s3 + $0x30] sm:$0xff]
  %v225 = vld [vmem:[%s3 + $0x38] sm:$0xff]
  %v226 = vld [vmem:[%s4] sm:$0x1]
  %v228 = vperm.slane %v226, 0
  %vm230 = vcmask 523264
  %v232 = vsel %vm230, %v217, 0
  %234 = vmatpush.msra.mxu0 0.0
  %235 = vmatpush.msra.mxu0 0.0
  %236 = vmatpush.msra.mxu0 0.0
  %237 = vmatpush.msra.mxu0 0.0
  %238 = vmatpush.msra.mxu0 0.0
  %239 = vmatpush.msra.mxu0 0.0
  %240 = vmatpush.msra.mxu0 0.0
  %241 = vmatpush.msra.mxu0 0.0
  %242 = vmatpush.msra.mxu0 %v225
  %243 = vmatpush.msra.mxu0 %v224
  %244 = vmatpush.msra.mxu0 %v223
  %245 = vmatpush.msra.mxu0 %v222
  %246 = vmatpush.msra.mxu0 %v221
  %247 = vmatpush.msra.mxu0 %v220
  %248 = vmatpush.msra.mxu0 %v219
  %249 = vmatpush.msra.mxu0 %v218
  %250 = vmatmul.f32.gmra.mxu0 %v232
  %v251 = vpop.f32.mrf.mxu0
  %v252 = vadd.f32 %v228, %v251
  %253 = vdwg.mxu0
  %v254 = vmax.f32 %v252, 0.0
  %v255 = vld [vmem:[%s5] sm:$0xff]
  %v256 = vld [vmem:[%s5 + $0x8] sm:$0xff]
  %v257 = vld [vmem:[%s5 + $0x10] sm:$0xff]
  %v258 = vld [vmem:[%s5 + $0x18] sm:$0xff]
  %v259 = vld [vmem:[%s6] sm:$0x1]
  %v261 = vperm.slane %v259, 0
  %vm263 = vcmask 261120
  %v265 = vsel %vm263, %v254, 0
  %267 = vmatpush.msra.mxu0 0.0
  %268 = vmatpush.msra.mxu0 0.0
  %269 = vmatpush.msra.mxu0 0.0
  %270 = vmatpush.msra.mxu0 0.0
  %271 = vmatpush.msra.mxu0 0.0
  %272 = vmatpush.msra.mxu0 0.0
  %273 = vmatpush.msra.mxu0 0.0
  %274 = vmatpush.msra.mxu0 0.0
  %275 = vmatpush.msra.mxu0 0.0
  %276 = vmatpush.msra.mxu0 0.0
  %277 = vmatpush.msra.mxu0 0.0
  %278 = vmatpush.msra.mxu0 0.0
  %279 = vmatpush.msra.mxu0 %v258
  %280 = vmatpush.msra.mxu0 %v257
  %281 = vmatpush.msra.mxu0 %v256
  %282 = vmatpush.msra.mxu0 %v255
  %283 = vmatmul.f32.gmra.mxu0 %v265
  %v284 = vpop.f32.mrf.mxu0
  %v285 = vadd.f32 %v261, %v284
  %286 = vdwg.mxu0
  %v287 = vmax.f32 %v285, 0.0
  %v288 = vld [vmem:[%s7] sm:$0xff]
  %v289 = vld [vmem:[%s7 + $0x8] sm:$0xff]
  %v290 = vld [vmem:[%s7 + $0x10] sm:$0xff]
  %v291 = vld [vmem:[%s7 + $0x18] sm:$0xff]
  %v292 = vld [vmem:[%s8] sm:$0x1]
  %v294 = vperm.slane %v292, 0
  %v297 = vsel %vm263, %v287, 0
  %299 = vmatpush.msra.mxu0 0.0
  %300 = vmatpush.msra.mxu0 0.0
  %301 = vmatpush.msra.mxu0 0.0
  %302 = vmatpush.msra.mxu0 0.0
  %303 = vmatpush.msra.mxu0 0.0
  %304 = vmatpush.msra.mxu0 0.0
  %305 = vmatpush.msra.mxu0 0.0
  %306 = vmatpush.msra.mxu0 0.0
  %307 = vmatpush.msra.mxu0 0.0
  %308 = vmatpush.msra.mxu0 0.0
  %309 = vmatpush.msra.mxu0 0.0
  %310 = vmatpush.msra.mxu0 0.0
  %311 = vmatpush.msra.mxu0 %v291
  %312 = vmatpush.msra.mxu0 %v290
  %313 = vmatpush.msra.mxu0 %v289
  %314 = vmatpush.msra.mxu0 %v288
  %315 = vmatmul.f32.gmra.mxu0 %v297
  %v316 = vpop.f32.mrf.mxu0
  %v317 = vadd.f32 %v294, %v316
  %318 = vdwg.mxu0
  %v319 = vtanh.pop %v317
  %vm320 = vcmask 31744
  %321 = vst.msk [vmem:[%s9] sm:$0xff] %vm320, %v319
  // Predicated region
  $region38: #{actor_forward.1} parent=0 // pred_check
    _
  $region39: #{actor_forward.1} parent=0 // pred_check_branch
    %323 = sbr.rel (0) target = $region41
  $region40: #{actor_forward.1} parent=0 // pred_region
    _
  $region41: #{actor_forward.1} parent=0 // pred_fallthru
    _
  // Predicated region
  $region42: #{actor_forward.1} parent=0 // pred_check
    _
  $region43: #{actor_forward.1} parent=0 // pred_check_branch
    %325 = sbr.rel (0) target = $region45
  $region44: #{actor_forward.1} parent=0 // pred_region
    _
  $region45: #{actor_forward.1} parent=0 // pred_fallthru
    _

</llo_original>
